<compile_context>
chip_gen: v5e
topology: v5e:2x2
jax: 0.10.0
libtpu: 0.0.40
codegen_flags: <defaults>
</compile_context>

<pallas_src>
import numpy as np
import jax
import jax.numpy as jnp
from jax.experimental import pallas as pl
from jax.experimental.pallas import tpu as pltpu


def _round_up(x: int, m: int) -> int:
    return ((x + m - 1) // m) * m


def mean_aggregator_pallas(feats, w_fold, b_fold, mask, *, u_tile=1024, e_tile=None,
                           bf16_epilogue=False):
    """
    feats  : (U, F)  float32 gathered unique-node features
    w_fold : (F, E)  float32 = W.T * bn_scale   (eval-mode BatchNorm scale folded in)
    b_fold : (E,)    float32 = bias * bn_scale + bn_shift
    mask   : (B, U)  float32 0/1 sample mask
    Returns (B, E) float32 == row_normalize(mask) @ tanh(feats @ w_fold + b_fold)

    Tiling notes:
      * B is a single full block (GraphSAGE-scale batches fit VMEM easily); at very
        large B you would reintroduce a B-tile parallel axis instead.
      * VMEM budget per step (double-buffered streamed operands):
          2*(U_tile*F + B_pad*U_tile)*2B  +  2*(F*e_tile + e_tile)*2B
          + B_pad*e_tile*4B (acc) + B_pad*e_tile*4B (out block)
        On v7x (64 MiB physical / 32 MiB scoped default) roughly halve u_tile vs a
        v5e/v6e config or set vmem_limit_bytes explicitly.
      * The w/b blocks only change with the (outer) E index; marking them
        pipeline_mode=pl.Buffered(1) would halve their VMEM footprint at large F*E.
      * bf16_epilogue=True is appropriate on v6e/v7x (bf16 VPU/EUP); keep False on v5e.
    """
    U, F = feats.shape
    E = w_fold.shape[1]
    B = mask.shape[0]
    assert mask.shape[1] == U

    # ---- TPU-friendly padded shapes -------------------------------------------------
    E_pad = _round_up(E, 128)                   # lane-dense output stores
    if e_tile is None:
        # <=256 keeps a single (parallel) E tile; at larger E use 256 to match the
        # v6e/v7x 256-wide MXU (fall back to 128 if E_pad isn't a 256 multiple).
        e_tile = E_pad if E_pad <= 256 else (256 if E_pad % 256 == 0 else 128)
    assert E_pad % e_tile == 0

    B_pad = _round_up(B, 16)                    # bf16 mask sublane packing

    # Balance U across cdiv(U, u_tile) tiles (each a multiple of 128) so a ragged U
    # (e.g. U=1100 at u_tile=1024) doesn't round up to a whole extra all-zero tile.
    n_u = max(1, -(-U // u_tile))
    U_tile = _round_up(-(-U // n_u), 128)
    U_pad = n_u * U_tile

    # bf16 MXU operands halve DMA bytes and run the MXU at full rate; padded rows/cols
    # are zero in mask / weights so they never contribute.
    feats_p = jnp.pad(feats, ((0, U_pad - U), (0, 0))).astype(jnp.bfloat16)
    w_p = jnp.pad(w_fold, ((0, 0), (0, E_pad - E))).astype(jnp.bfloat16)
    b_p = jnp.pad(b_fold.reshape(1, E), ((0, 0), (0, E_pad - E))).astype(jnp.float32)
    mask_p = jnp.pad(mask, ((0, B_pad - B), (0, U_pad - U))).astype(jnp.bfloat16)

    # Exact f32 row-normalization factors computed once here (drops the per-step XLU
    # reduce and the approx-reciprocal error). Padded rows get 0 and are sliced off.
    inv = 1.0 / jnp.maximum(jnp.sum(mask, axis=1, keepdims=True), 1.0)
    inv_p = jnp.pad(inv.astype(jnp.float32), ((0, B_pad - B), (0, 0)))

    def kernel(feats_ref, w_ref, b_ref, mask_ref, inv_ref, out_ref, acc_ref):
        k = pl.program_id(1)

        @pl.when(k == 0)
        def _init():
            acc_ref[...] = jnp.zeros_like(acc_ref)

        # Feature transform for this (U_tile, e_tile) slice -- computed exactly once
        # (B is a single block, so nothing here is recomputed across the batch).
        h = jnp.dot(feats_ref[...], w_ref[...], preferred_element_type=jnp.float32)
        if bf16_epilogue:
            # v6e/v7x: bf16 VPU/EUP path, and no separate f32->bf16 cast pass.
            h = jnp.tanh(h.astype(jnp.bfloat16) + b_ref[...].astype(jnp.bfloat16))
        else:
            # v5e-safe: its VPU/EUP have no bf16 path.
            h = jnp.tanh(h + b_ref[...]).astype(jnp.bfloat16)
        # Dropout: identity in eval mode.
        # TODO(synk): train-mode dropout RNG / train-mode BatchNorm batch statistics
        # are intentionally not reproduced.

        # Aggregation: (B_pad, U_tile) @ (U_tile, e_tile); M = B_pad fills the MXU rows.
        acc_ref[...] += jnp.dot(mask_ref[...], h, preferred_element_type=jnp.float32)

        @pl.when(k == pl.num_programs(1) - 1)
        def _finalize():
            out_ref[...] = (acc_ref[...] * inv_ref[...]).astype(out_ref.dtype)

    grid = (E_pad // e_tile, U_pad // U_tile)

    out = pl.pallas_call(
        kernel,
        out_shape=jax.ShapeDtypeStruct((B_pad, E_pad), jnp.float32),
        grid_spec=pltpu.PrefetchScalarGridSpec(
            num_scalar_prefetch=0,
            grid=grid,
            in_specs=[
                pl.BlockSpec((U_tile, F), lambda e, k: (k, 0)),       # streamed feats
                pl.BlockSpec((F, e_tile), lambda e, k: (0, e)),       # folded weight slice
                pl.BlockSpec((1, e_tile), lambda e, k: (0, e)),       # folded bias slice
                pl.BlockSpec((B_pad, U_tile), lambda e, k: (0, k)),   # full-batch mask tile
                pl.BlockSpec((B_pad, 1), lambda e, k: (0, 0)),        # exact 1/rowsum
            ],
            out_specs=pl.BlockSpec((B_pad, e_tile), lambda e, k: (0, e)),
            scratch_shapes=[
                pltpu.VMEM((B_pad, e_tile), jnp.float32),   # full-batch f32 accumulator
            ],
        ),
        compiler_params=pltpu.CompilerParams(
            # E tiles are independent -> "parallel" (lets v7x shard across its 2 TCs at
            # realistic E); U is the online-reduction axis -> "arbitrary".
            dimension_semantics=("parallel", "arbitrary"),
        ),
    )(feats_p, w_p, b_p, mask_p, inv_p)

    return out[:B, :E]


if __name__ == "__main__":
    # ---- module hyperparameters (small, consistent with __init__) ----
    num_nodes = 32
    feature_dim = 64
    emb_dim = 32
    n_nbr_samples = 3
    batch = 16          # len(node_list)

    # ---- deterministic synthetic graph: ring with 4 neighbors per node ----
    g = {n: [(n - 2) % num_nodes, (n - 1) % num_nodes,
             (n + 1) % num_nodes, (n + 2) % num_nodes] for n in range(num_nodes)}
    node_list = list(range(batch))

    # ---- neighbor sampling (host Python, mirrors forward()) ----
    rng = np.random.default_rng(0)
    samples = []
    for node in node_list:
        nbrs = list(g[node])
        if len(nbrs) >= n_nbr_samples:
            samp = list(rng.choice(nbrs, n_nbr_samples, replace=False)) + [node]
        else:
            samp = nbrs + [node]
        samples.append([int(s) for s in samp])
    unique_nodes_list = sorted(set().union(*(set(s) for s in samples)))
    unique_nodes_dict = {n: i for i, n in enumerate(unique_nodes_list)}
    U = len(unique_nodes_list)

    mask_np = np.zeros((batch, U), dtype=np.float32)
    for node_idx, node_nbrs in enumerate(samples):
        for alter in node_nbrs:
            mask_np[node_idx, unique_nodes_dict[alter]] = 1.0

    # ---- deterministic parameters / features ----
    key = jax.random.PRNGKey(0)
    k_feat, k_w, k_b = jax.random.split(key, 3)
    features_table = jax.random.normal(k_feat, (num_nodes, feature_dim), jnp.float32)
    W = jax.random.normal(k_w, (emb_dim, feature_dim), jnp.float32) * 0.1   # nn.Linear weight
    b = jax.random.normal(k_b, (emb_dim,), jnp.float32) * 0.1               # nn.Linear bias
    # BatchNorm1d defaults (eval mode): gamma=1, beta=0, running_mean=0, running_var=1
    gamma = jnp.ones((emb_dim,), jnp.float32)
    beta = jnp.zeros((emb_dim,), jnp.float32)
    run_mean = jnp.zeros((emb_dim,), jnp.float32)
    run_var = jnp.ones((emb_dim,), jnp.float32)
    eps = 1e-5
    bn_scale = gamma / jnp.sqrt(run_var + eps)
    bn_shift = beta - run_mean * bn_scale

    # Fold Linear bias + eval-mode BatchNorm affine into the weights (exact in eval mode).
    w_fold = W.T * bn_scale[None, :]              # (F, E)
    b_fold = b * bn_scale + bn_shift              # (E,)

    # Gather unique-node features (plain JAX glue).
    # TODO(synk): at realistic U, fuse this gather into the kernel (features_table via
    # memory_space=pl.ANY + scalar-prefetched idx, per-tile DMA row gather) to skip the
    # extra HBM pass over the gathered (U, F) array.
    idx = jnp.asarray(unique_nodes_list, jnp.int32)
    feats = features_table[idx]                   # (U, F)
    mask = jnp.asarray(mask_np)                   # (B, U)

    out = mean_aggregator_pallas(feats, w_fold, b_fold, mask)
    out = jax.block_until_ready(out)

    # ---- reference (plain JAX, f32).  Kernel uses bf16 MXU operands, so compare with
    # bf16-level tolerance. ----
    h_ref = jnp.tanh(feats @ w_fold + b_fold[None, :])
    row_sum = jnp.sum(mask, axis=1, keepdims=True)
    ref = (mask @ h_ref) / jnp.maximum(row_sum, 1.0)
    assert out.shape == (batch, emb_dim)
    np.testing.assert_allclose(np.asarray(out), np.asarray(ref), rtol=2e-2, atol=2e-2)

    print("KERNEL_OK")
</pallas_src>

<mosaic_0001>
module attributes {stable_mosaic.version = 11 : i64} {
  func.func @kernel(%arg0: i32, %arg1: i32, %arg2: memref<128x64xbf16, #tpu.memory_space<vmem>>, %arg3: memref<64x128xbf16, #tpu.memory_space<vmem>>, %arg4: memref<1x128xf32, #tpu.memory_space<vmem>>, %arg5: memref<16x128xbf16, #tpu.memory_space<vmem>>, %arg6: memref<16x1xf32, #tpu.memory_space<vmem>>, %arg7: memref<16x128xf32, #tpu.memory_space<vmem>>, %arg8: memref<16x128xf32, #tpu.memory_space<vmem>>) attributes {dimension_semantics = [#tpu.dimension_semantics<parallel>, #tpu.dimension_semantics<arbitrary>], iteration_bounds = array<i64: 1, 1>, scalar_prefetch = 0 : i64, scratch_operands = 1 : i64, tpu.core_type = #tpu.core_type<tc>, window_params = [{transform_indices = @transform_0, window_bounds = array<i64: 128, 64>}, {transform_indices = @transform_1, window_bounds = array<i64: 64, 128>}, {transform_indices = @transform_2, window_bounds = array<i64: 1, 128>}, {transform_indices = @transform_3, window_bounds = array<i64: 16, 128>}, {pipeline_mode = #tpu.pipeline_mode<synchronous>, transform_indices = @transform_4, window_bounds = array<i64: 16, 1>}, {transform_indices = @transform_5, window_bounds = array<i64: 16, 128>}]} {
    %c0_i32 = arith.constant 0 : i32
    %0 = arith.cmpi eq, %arg1, %c0_i32 : i32
    %1 = arith.extui %0 : i1 to i32
    %c0_i32_0 = arith.constant 0 : i32
    %2 = arith.cmpi ne, %1, %c0_i32_0 : i32
    scf.if %2 {
      %cst_15 = arith.constant 0.000000e+00 : f32
      %19 = vector.broadcast %cst_15 : f32 to vector<16x128xf32>
      %c0_16 = arith.constant 0 : index
      %c0_17 = arith.constant 0 : index
      %20 = vector.load %arg8[%c0_16, %c0_17] : memref<16x128xf32, #tpu.memory_space<vmem>>, vector<16x128xf32>
      tpu.vector_store %arg8[%c0_16, %c0_17], %19 {strides = array<i32>} : memref<16x128xf32, #tpu.memory_space<vmem>>, vector<16x128xf32>,
    } else {
    }
    %c0 = arith.constant 0 : index
    %c0_1 = arith.constant 0 : index
    %3 = vector.load %arg2[%c0, %c0_1] : memref<128x64xbf16, #tpu.memory_space<vmem>>, vector<128x64xbf16>
    %c0_2 = arith.constant 0 : index
    %c0_3 = arith.constant 0 : index
    %4 = vector.load %arg3[%c0_2, %c0_3] : memref<64x128xbf16, #tpu.memory_space<vmem>>, vector<64x128xbf16>
    %cst = arith.constant dense<0.000000e+00> : vector<128x128xf32>
    %5 = tpu.matmul %3, %4, %cst {dimension_numbers = #tpu.dot_dimension_numbers<[1], [0], [0], [1], [0, 0, 1, 1], [], []>} : vector<128x64xbf16>, vector<64x128xbf16>, vector<128x128xf32> -> vector<128x128xf32>
    %c0_4 = arith.constant 0 : index
    %c0_5 = arith.constant 0 : index
    %6 = vector.load %arg4[%c0_4, %c0_5] : memref<1x128xf32, #tpu.memory_space<vmem>>, vector<1x128xf32>
    %7 = vector.broadcast %6 : vector<1x128xf32> to vector<128x128xf32>
    %8 = arith.addf %5, %7 : vector<128x128xf32>
    %9 = math.tanh %8 : vector<128x128xf32>
    %10 = arith.truncf %9 : vector<128x128xf32> to vector<128x128xbf16>
    %c0_6 = arith.constant 0 : index
    %c0_7 = arith.constant 0 : index
    %11 = vector.load %arg8[%c0_6, %c0_7] : memref<16x128xf32, #tpu.memory_space<vmem>>, vector<16x128xf32>
    %c0_8 = arith.constant 0 : index
    %c0_9 = arith.constant 0 : index
    %12 = vector.load %arg5[%c0_8, %c0_9] : memref<16x128xbf16, #tpu.memory_space<vmem>>, vector<16x128xbf16>
    %cst_10 = arith.constant dense<0.000000e+00> : vector<16x128xf32>
    %13 = tpu.matmul %12, %10, %cst_10 {dimension_numbers = #tpu.dot_dimension_numbers<[1], [0], [0], [1], [0, 0, 1, 1], [], []>} : vector<16x128xbf16>, vector<128x128xbf16>, vector<16x128xf32> -> vector<16x128xf32>
    %14 = arith.addf %11, %13 : vector<16x128xf32>
    %c0_11 = arith.constant 0 : index
    %c0_12 = arith.constant 0 : index
    %15 = vector.load %arg8[%c0_11, %c0_12] : memref<16x128xf32, #tpu.memory_space<vmem>>, vector<16x128xf32>
    tpu.vector_store %arg8[%c0_11, %c0_12], %14 {strides = array<i32>} : memref<16x128xf32, #tpu.memory_space<vmem>>, vector<16x128xf32>,
    %c0_i32_13 = arith.constant 0 : i32
    %16 = arith.cmpi eq, %arg1, %c0_i32_13 : i32
    %17 = arith.extui %16 : i1 to i32
    %c0_i32_14 = arith.constant 0 : i32
    %18 = arith.cmpi ne, %17, %c0_i32_14 : i32
    scf.if %18 {
      %c0_15 = arith.constant 0 : index
      %c0_16 = arith.constant 0 : index
      %19 = vector.load %arg8[%c0_15, %c0_16] : memref<16x128xf32, #tpu.memory_space<vmem>>, vector<16x128xf32>
      %c0_17 = arith.constant 0 : index
      %c0_18 = arith.constant 0 : index
      %20 = vector.load %arg6[%c0_17, %c0_18] : memref<16x1xf32, #tpu.memory_space<vmem>>, vector<16x1xf32>
      %21 = vector.broadcast %20 : vector<16x1xf32> to vector<16x128xf32>
      %22 = arith.mulf %19, %21 : vector<16x128xf32>
      %c0_19 = arith.constant 0 : index
      %c0_20 = arith.constant 0 : index
      %23 = vector.load %arg7[%c0_19, %c0_20] : memref<16x128xf32, #tpu.memory_space<vmem>>, vector<16x128xf32>
      tpu.vector_store %arg7[%c0_19, %c0_20], %22 {strides = array<i32>} : memref<16x128xf32, #tpu.memory_space<vmem>>, vector<16x128xf32>,
    } else {
    }
    return
  }
  func.func @transform_0(%arg0: i32, %arg1: i32) -> (i32, i32) {
    %c0_i32 = arith.constant 0 : i32
    %c0_i32_0 = arith.constant 0 : i32
    return %arg1, %c0_i32 : i32, i32
  }
  func.func @transform_1(%arg0: i32, %arg1: i32) -> (i32, i32) {
    %c0_i32 = arith.constant 0 : i32
    %c0_i32_0 = arith.constant 0 : i32
    return %c0_i32, %arg0 : i32, i32
  }
  func.func @transform_2(%arg0: i32, %arg1: i32) -> (i32, i32) {
    %c0_i32 = arith.constant 0 : i32
    %c0_i32_0 = arith.constant 0 : i32
    return %c0_i32, %arg0 : i32, i32
  }
  func.func @transform_3(%arg0: i32, %arg1: i32) -> (i32, i32) {
    %c0_i32 = arith.constant 0 : i32
    %c0_i32_0 = arith.constant 0 : i32
    return %c0_i32, %arg1 : i32, i32
  }
  func.func @transform_4(%arg0: i32, %arg1: i32) -> (i32, i32) {
    %c0_i32 = arith.constant 0 : i32
    %c0_i32_0 = arith.constant 0 : i32
    %c0_i32_1 = arith.constant 0 : i32
    return %c0_i32, %c0_i32_0 : i32, i32
  }
  func.func @transform_5(%arg0: i32, %arg1: i32) -> (i32, i32) {
    %c0_i32 = arith.constant 0 : i32
    %c0_i32_0 = arith.constant 0 : i32
    return %c0_i32, %arg0 : i32, i32
  }
}

</mosaic_0001>

<llo_original>
// kernel: tpu_custom_call.1
$region0: #{tpu_custom_call.1}
  #allocation0 [shape = 'u32[]', space=smem, size = 0x4, offset = 0x4, fixed_abs, tag = 'smem constant byte address 0x4 - core index']
  #allocation1 [shape = 'u32[72,128]{1,0:T(1,128)}', space=vmem, size = 0x9000, scoped, tag = 'internal scratch']
  #allocation2 [shape = 'f32[16,128]{1,0:T(8,128)}', space=vmem, size = 0x2000, scoped, tag = 'scratch operand']
  %s0 = inlined_call_operand.vmem [shape: bf16[128,64], index: 0, kind: input, shape index: {}]
  %s1 = inlined_call_operand.vmem [shape: bf16[64,128], index: 1, kind: input, shape index: {}]
  %s2 = inlined_call_operand.vmem [shape: f32[1,128], index: 2, kind: input, shape index: {}]
  %s3 = inlined_call_operand.vmem [shape: bf16[16,128], index: 3, kind: input, shape index: {}]
  %s4 = inlined_call_operand.vmem [shape: f32[16,1], index: 4, kind: input, shape index: {}]
  %s5 = inlined_call_operand.hbm [shape: f32[16,128], index: 5, kind: output, shape index: {}]
  %s6 = sld [smem:[#allocation0]]
  $region38: #{tpu_custom_call.1} parent=0
    _
  %s8 = ssub.s32 1, %s6
  %s9 = scalar_select 0, %s8, %s6
  $region1: #{tpu_custom_call.1} parent=0
    #allocation3 [shape = 'u8[8192]{0}', space=vmem, size = 0x2000, scoped, tag = 'output window, operand 0, single buffered']
    #allocation4 [shape = 's32[1]{0}', space=sflag, size = 0x4, scoped, tag = 'scoped memory for tpu_custom_call.1']
    %10 = vsyncpa [#allocation4], 0
    // Predicated region
    $region2: #{tpu_custom_call.1} parent=1 // pred_check
      _
    $region3: #{tpu_custom_call.1} parent=1 // pred_check_branch
      %12 = sbr.rel (0) target = $region5
    $region4: #{tpu_custom_call.1} parent=1 // pred_region
      _
    $region5: #{tpu_custom_call.1} parent=1 // pred_fallthru
      _
    // Predicated region
    $region6: #{tpu_custom_call.1} parent=1 // pred_check
      _
    $region7: #{tpu_custom_call.1} parent=1 // pred_check_branch
      %14 = sbr.rel (0) target = $region9
    $region8: #{tpu_custom_call.1} parent=1 // pred_region
      _
    $region9: #{tpu_custom_call.1} parent=1 // pred_fallthru
      _
    // Predicated region
    $region10: #{tpu_custom_call.1} parent=1 // pred_check
      _
    $region11: #{tpu_custom_call.1} parent=1 // pred_check_branch
      %16 = sbr.rel (0) target = $region13
    $region12: #{tpu_custom_call.1} parent=1 // pred_region
      _
    $region13: #{tpu_custom_call.1} parent=1 // pred_fallthru
      _
    // Predicated region
    $region14: #{tpu_custom_call.1} parent=1 // pred_check
      _
    $region15: #{tpu_custom_call.1} parent=1 // pred_check_branch
      %18 = sbr.rel (0) target = $region17
    $region16: #{tpu_custom_call.1} parent=1 // pred_region
      _
    $region17: #{tpu_custom_call.1} parent=1 // pred_fallthru
      _
    // Predicated region
    $region18: #{tpu_custom_call.1} parent=1 // pred_check
      _
    $region19: #{tpu_custom_call.1} parent=1 // pred_check_branch
      %20 = sbr.rel (0) target = $region21
    $region20: #{tpu_custom_call.1} parent=1 // pred_region
      _
    $region21: #{tpu_custom_call.1} parent=1 // pred_fallthru
      _
    %p22 = scmp.eq.s32.totalorder 0, 0
    // Predicated region
    $region22: #{tpu_custom_call.1} parent=1 // pred_check
      %p23 = pneg %p22
    $region23: #{tpu_custom_call.1} parent=1 // pred_check_branch
      %25 = sbr.rel (%p23) target = $region25
    $region24: #{tpu_custom_call.1} parent=1 // pred_region
      %26 = vst [vmem:[#allocation2] sm:$0xff] 0.0
      %27 = vst [vmem:[#allocation2 + $0x8] sm:$0xff] 0.0
    $region25: #{tpu_custom_call.1} parent=1 // pred_fallthru
      _
    %v28 = vld [vmem:[%s0] sm:$0xf]
    %v29 = vld [vmem:[%s0 + $0x4] sm:$0xf]
    %v30 = vld [vmem:[%s0 + $0x8] sm:$0xf]
    %v31 = vld [vmem:[%s0 + $0xc] sm:$0xf]
    %v32 = vld [vmem:[%s0 + $0x10] sm:$0xf]
    %v33 = vld [vmem:[%s0 + $0x14] sm:$0xf]
    %v34 = vld [vmem:[%s0 + $0x18] sm:$0xf]
    %v35 = vld [vmem:[%s0 + $0x1c] sm:$0xf]
    %v36 = vld [vmem:[%s0 + $0x20] sm:$0xf]
    %v37 = vld [vmem:[%s0 + $0x24] sm:$0xf]
    %v38 = vld [vmem:[%s0 + $0x28] sm:$0xf]
    %v39 = vld [vmem:[%s0 + $0x2c] sm:$0xf]
    %v40 = vld [vmem:[%s0 + $0x30] sm:$0xf]
    %v41 = vld [vmem:[%s0 + $0x34] sm:$0xf]
    %v42 = vld [vmem:[%s0 + $0x38] sm:$0xf]
    %v43 = vld [vmem:[%s0 + $0x3c] sm:$0xf]
    %v44 = vld [vmem:[%s1] sm:$0xf]
    %v45 = vld [vmem:[%s1 + $0x4] sm:$0xf]
    %v46 = vld [vmem:[%s1 + $0x8] sm:$0xf]
    %v47 = vld [vmem:[%s1 + $0xc] sm:$0xf]
    %v48 = vld [vmem:[%s1 + $0x10] sm:$0xf]
    %v49 = vld [vmem:[%s1 + $0x14] sm:$0xf]
    %v50 = vld [vmem:[%s1 + $0x18] sm:$0xf]
    %v51 = vld [vmem:[%s1 + $0x1c] sm:$0xf]
    %v52 = vld [vmem:[%s2] sm:$0x1]
    %v54 = vperm.slane %v52, 0
    %v72 = vunpack.c.l.b16 %v28
    %v73 = vunpack.c.l.b16 %v29
    %v74 = vunpack.c.l.b16 %v30
    %v75 = vunpack.c.l.b16 %v31
    %v76 = vunpack.c.l.b16 %v32
    %v77 = vunpack.c.l.b16 %v33
    %v78 = vunpack.c.l.b16 %v34
    %v79 = vunpack.c.l.b16 %v35
    %v80 = vunpack.c.l.b16 %v36
    %v81 = vunpack.c.l.b16 %v37
    %v82 = vunpack.c.l.b16 %v38
    %v83 = vunpack.c.l.b16 %v39
    %v84 = vunpack.c.l.b16 %v40
    %v85 = vunpack.c.l.b16 %v41
    %v86 = vunpack.c.l.b16 %v42
    %v87 = vunpack.c.l.b16 %v43
    %v88 = vpack.c.b16 %v73, %v72
    %v89 = vpack.c.b16 %v75, %v74
    %v90 = vpack.c.b16 %v77, %v76
    %v91 = vpack.c.b16 %v79, %v78
    %v92 = vpack.c.b16 %v81, %v80
    %v93 = vpack.c.b16 %v83, %v82
    %v94 = vpack.c.b16 %v85, %v84
    %v95 = vpack.c.b16 %v87, %v86
    %v104 = vunpack.c.l.b16 %v44
    %v105 = vunpack.c.l.b16 %v45
    %v106 = vunpack.c.l.b16 %v46
    %v107 = vunpack.c.l.b16 %v47
    %v108 = vunpack.c.l.b16 %v48
    %v109 = vunpack.c.l.b16 %v49
    %v110 = vunpack.c.l.b16 %v50
    %v111 = vunpack.c.l.b16 %v51
    %v112 = vpack.c.b16 %v105, %v104
    %v113 = vpack.c.b16 %v107, %v106
    %v114 = vpack.c.b16 %v109, %v108
    %v115 = vpack.c.b16 %v111, %v110
    %vm120 = vcmask 523264
    %v122 = vsel %vm120, %v88, 0
    %v125 = vsel %vm120, %v89, 0
    %v128 = vsel %vm120, %v90, 0
    %v131 = vsel %vm120, %v91, 0
    %v134 = vsel %vm120, %v92, 0
    %v137 = vsel %vm120, %v93, 0
    %v140 = vsel %vm120, %v94, 0
    %v143 = vsel %vm120, %v95, 0
    %145 = vmatpush.bf16.msra.mxu0 0
    %146 = vmatpush.bf16.msra.mxu0 0
    %147 = vmatpush.bf16.msra.mxu0 0
    %148 = vmatpush.bf16.msra.mxu0 0
    %149 = vmatpush.bf16.msra.mxu0 %v115
    %150 = vmatpush.bf16.msra.mxu0 %v114
    %151 = vmatpush.bf16.msra.mxu0 %v113
    %152 = vmatpush.bf16.msra.mxu0 %v112
    %153 = vmatmul.bf16.gmra.mxu0 %v122
    %v154 = vpop.f32.mrf.mxu0
    %v155 = vadd.f32 %v54, %v154
    %v156 = vpop.f32.mrf.mxu0
    %v157 = vadd.f32 %v54, %v156
    %158 = vmatmul.bf16.gmra.mxu0 %v125
    %v159 = vpop.f32.mrf.mxu0
    %v160 = vadd.f32 %v54, %v159
    %v161 = vpop.f32.mrf.mxu0
    %v162 = vadd.f32 %v54, %v161
    %163 = vmatmul.bf16.gmra.mxu0 %v128
    %v164 = vpop.f32.mrf.mxu0
    %v165 = vadd.f32 %v54, %v164
    %v166 = vpop.f32.mrf.mxu0
    %v167 = vadd.f32 %v54, %v166
    %168 = vmatmul.bf16.gmra.mxu0 %v131
    %v169 = vpop.f32.mrf.mxu0
    %v170 = vadd.f32 %v54, %v169
    %v171 = vpop.f32.mrf.mxu0
    %v172 = vadd.f32 %v54, %v171
    %173 = vmatmul.bf16.gmra.mxu0 %v134
    %v174 = vpop.f32.mrf.mxu0
    %v175 = vadd.f32 %v54, %v174
    %v176 = vpop.f32.mrf.mxu0
    %v177 = vadd.f32 %v54, %v176
    %178 = vmatmul.bf16.gmra.mxu0 %v137
    %v179 = vpop.f32.mrf.mxu0
    %v180 = vadd.f32 %v54, %v179
    %v181 = vpop.f32.mrf.mxu0
    %v182 = vadd.f32 %v54, %v181
    %183 = vmatmul.bf16.gmra.mxu0 %v140
    %v184 = vpop.f32.mrf.mxu0
    %v185 = vadd.f32 %v54, %v184
    %v186 = vpop.f32.mrf.mxu0
    %v187 = vadd.f32 %v54, %v186
    %188 = vmatmul.bf16.gmra.mxu0 %v143
    %v189 = vpop.f32.mrf.mxu0
    %v190 = vadd.f32 %v54, %v189
    %v191 = vpop.f32.mrf.mxu0
    %v192 = vadd.f32 %v54, %v191
    %193 = vdwg.mxu0
    %v194 = vtanh.pop %v155
    %v195 = vtanh.pop %v157
    %v196 = vtanh.pop %v160
    %v197 = vtanh.pop %v162
    %v198 = vtanh.pop %v165
    %v199 = vtanh.pop %v167
    %v200 = vtanh.pop %v170
    %v201 = vtanh.pop %v172
    %v202 = vtanh.pop %v175
    %v203 = vtanh.pop %v177
    %v204 = vtanh.pop %v180
    %v205 = vtanh.pop %v182
    %v206 = vtanh.pop %v185
    %v207 = vtanh.pop %v187
    %v208 = vtanh.pop %v190
    %v209 = vtanh.pop %v192
    %v210 = vpack.c.bf16 %v195, %v194
    %v211 = vpack.c.bf16 %v197, %v196
    %v212 = vpack.c.bf16 %v199, %v198
    %v213 = vpack.c.bf16 %v201, %v200
    %v214 = vpack.c.bf16 %v203, %v202
    %v215 = vpack.c.bf16 %v205, %v204
    %v216 = vpack.c.bf16 %v207, %v206
    %v217 = vpack.c.bf16 %v209, %v208
    %v218 = vld [vmem:[#allocation2] sm:$0xff]
    %v219 = vld [vmem:[#allocation2 + $0x8] sm:$0xff]
    %v220 = vld [vmem:[%s3] sm:$0xf]
    %v221 = vld [vmem:[%s3 + $0x4] sm:$0xf]
    %v224 = vunpack.c.l.b16 %v220
    %v225 = vunpack.c.l.b16 %v221
    %v226 = vpack.c.b16 %v225, %v224
    %228 = vmatpush.bf16.msra.mxu0 %v217
    %229 = vmatpush.bf16.msra.mxu0 %v216
    %230 = vmatpush.bf16.msra.mxu0 %v215
    %231 = vmatpush.bf16.msra.mxu0 %v214
    %232 = vmatpush.bf16.msra.mxu0 %v213
    %233 = vmatpush.bf16.msra.mxu0 %v212
    %234 = vmatpush.bf16.msra.mxu0 %v211
    %235 = vmatpush.bf16.msra.mxu0 %v210
    %236 = vmatmul.bf16.gmra.mxu0 %v226
    %v237 = vpop.f32.mrf.mxu0
    %v238 = vadd.f32 0.0, %v237
    %v239 = vpop.f32.mrf.mxu0
    %v240 = vadd.f32 0.0, %v239
    %241 = vdwg.mxu0
    %v242 = vadd.f32 %v218, %v238
    %v243 = vadd.f32 %v219, %v240
    %244 = vst [vmem:[#allocation2] sm:$0xff] %v242
    %245 = vst [vmem:[#allocation2 + $0x8] sm:$0xff] %v243
    // Predicated region
    $region26: #{tpu_custom_call.1} parent=1 // pred_check
      %p246 = pneg %p22
    $region27: #{tpu_custom_call.1} parent=1 // pred_check_branch
      %248 = sbr.rel (%p246) target = $region29
    $region28: #{tpu_custom_call.1} parent=1 // pred_region
      %v249 = vld [vmem:[#allocation2] sm:$0xff]
      %v250 = vld [vmem:[#allocation2 + $0x8] sm:$0xff]
      %v251 = vld [vmem:[%s4] sm:$0xff]
      %v252 = vld [vmem:[%s4 + $0x8] sm:$0xff]
      %254 = vset.pattern.permute.xlu0 0
      %255 = vperm.xlu0 %254, %v251
      %v256 = vpop.permute.xlu0 %255
      %259 = vset.pattern.permute.xlu0 0
      %260 = vperm.xlu0 %259, %v252
      %v261 = vpop.permute.xlu0 %260
      %v263 = vmul.f32 %v249, %v256
      %v264 = vmul.f32 %v250, %v261
      %265 = vst [vmem:[#allocation3] sm:$0xff] %v263
      %266 = vst [vmem:[#allocation3 + $0x8] sm:$0xff] %v264
    $region29: #{tpu_custom_call.1} parent=1 // pred_fallthru
      _
    // Predicated region
    $region30: #{tpu_custom_call.1} parent=1 // pred_check
      _
    $region31: #{tpu_custom_call.1} parent=1 // pred_check_branch
      %268 = sbr.rel (0) target = $region33
    $region32: #{tpu_custom_call.1} parent=1 // pred_region
      %270 = vsyncadd [#allocation4], 0
      %s271 = sshll.u32 [#allocation3], 4
      %s272 = int_to_ptr.vmem [resolvable:$true] %s271
      %s273 = sshll.u32 %s5, 4
      %s274 = int_to_ptr.hbm [resolvable:$true] %s273
      %279 = dma.vmem_to_hbm [thread:$0]  %s272, 256, %s274, [#allocation4], 128, 128, 8
    $region33: #{tpu_custom_call.1} parent=1 // pred_fallthru
      _
    // Predicated region
    $region34: #{tpu_custom_call.1} parent=1 // pred_check
      _
    $region35: #{tpu_custom_call.1} parent=1 // pred_check_branch
      %281 = sbr.rel (0) target = $region37
    $region36: #{tpu_custom_call.1} parent=1 // pred_region
      %283 = dma.done [#allocation4], 256
    $region37: #{tpu_custom_call.1} parent=1 // pred_fallthru
      _
    %284 = vsyncpa [#allocation4], 1

</llo_original>
